<compile_context>
chip_gen: v7x
topology: tpu7x:2x2x1
jax: 0.10.0
libtpu: 0.0.40
codegen_flags: <defaults>
</compile_context>

<pallas_src>
import math

import jax
import jax.numpy as jnp
from jax.experimental import pallas as pl
from jax.experimental.pallas import tpu as pltpu


def _asi_fused_kernel(x_ref, wh_t_ref, wo_ref, o_ref):
    """x_ref: (TB, N); wh_t_ref: (N, 2m); wo_ref: (1, 2m); o_ref: (TB, 1)."""
    # Stage 1: one MXU matmul covering both branches, f32 accumulation.
    h = jnp.dot(x_ref[...], wh_t_ref[...], preferred_element_type=jnp.float32)
    h = jnp.maximum(h, 0.0)                                   # VPU ReLU
    # Stage 2: (2m -> 1) projection as VPU mul + lane reduce; branch
    # subtraction and the 1/sqrt(m) scale are folded into wo already.
    o = jnp.sum(h * wo_ref[...], axis=-1, keepdims=True)      # (TB, 1)
    o_ref[...] = o.astype(o_ref.dtype)


def _round_up(v, a):
    return ((v + a - 1) // a) * a


def neural_network_asi(x, w1_hidden, w1_out, w2_hidden, w2_out, *, tile_b=1024):
    """x: (B, N); w*_hidden: (m, N); w*_out: (1, m). Returns (B, 1) float32."""
    B, N = x.shape
    m = w1_hidden.shape[0]
    two_m = 2 * m

    # ---- wrapper-side branch fusion + scale folding -------------------------
    # Wh^T: (N, 2m)  (pre-transposed so the kernel never transposes).
    wh_t = jnp.concatenate([w1_hidden, w2_hidden], axis=0).T.astype(jnp.float32)
    # Wo row: (1, 2m), branch 2 negated, total scale 1/sqrt(m) folded in.
    scale = 1.0 / math.sqrt(m)
    wo = (jnp.concatenate([w1_out, -w2_out], axis=1) * scale).astype(jnp.float32)
    x = x.astype(jnp.float32)

    if B <= tile_b:
        # Flat VMEM-resident call: no grid, no per-step pipeline machinery.
        return pl.pallas_call(
            _asi_fused_kernel,
            out_shape=jax.ShapeDtypeStruct((B, 1), jnp.float32),
            in_specs=[
                pl.BlockSpec(memory_space=pltpu.MemorySpace.VMEM),  # x
                pl.BlockSpec(memory_space=pltpu.MemorySpace.VMEM),  # fused Wh^T
                pl.BlockSpec(memory_space=pltpu.MemorySpace.VMEM),  # fused Wo row
            ],
            out_specs=pl.BlockSpec(memory_space=pltpu.MemorySpace.VMEM),
        )(x, wh_t, wo)

    # ---- batch-tiled path: grid over B, marked parallel ----------------------
    # Clamp the batch tile so double-buffered x tiles + resident weights +
    # f32 hidden activations stay comfortably under VMEM (budget ~16 MiB).
    vmem_budget = 16 * 1024 * 1024
    resident = 4 * (N * two_m + two_m)                       # weights
    per_row = 4 * (2 * N + 2 * 1 + two_m)                    # x(dbl) + out(dbl) + h
    max_tile = max(8, (vmem_budget - resident) // max(per_row, 1))
    tile_b = max(8, min(_round_up(tile_b, 8), _round_up(max_tile, 8)))

    grid_b = pl.cdiv(B, tile_b)
    b_pad = grid_b * tile_b
    if b_pad != B:
        x = jnp.pad(x, ((0, b_pad - B), (0, 0)))

    out = pl.pallas_call(
        _asi_fused_kernel,
        out_shape=jax.ShapeDtypeStruct((b_pad, 1), jnp.float32),
        grid=(grid_b,),
        in_specs=[
            pl.BlockSpec((tile_b, N), lambda i: (i, 0)),     # x batch tile
            pl.BlockSpec((N, two_m), lambda i: (0, 0)),      # fused Wh^T (resident)
            pl.BlockSpec((1, two_m), lambda i: (0, 0)),      # fused Wo row (resident)
        ],
        out_specs=pl.BlockSpec((tile_b, 1), lambda i: (i, 0)),
        compiler_params=pltpu.CompilerParams(
            # Batch tiles are independent -> megacore / 2-TC (v7x) split.
            dimension_semantics=("parallel",),
        ),
    )(x, wh_t, wo)
    return out[:B]


def _reference(x, w1h, w1o, w2h, w2o):
    """Pure-JAX mirror of the PyTorch forward."""
    m = w1h.shape[0]
    s = math.sqrt(2.0 / m)
    o1 = jnp.maximum(x @ w1h.T, 0.0) @ w1o.T * s
    o2 = jnp.maximum(x @ w2h.T, 0.0) @ w2o.T * s
    return math.sqrt(2.0) / 2.0 * (o1 - o2)


if __name__ == "__main__":
    # Small shapes consistent with the module: N input features, m hidden units.
    B, N, m = 8, 32, 32

    key = jax.random.PRNGKey(0)
    kx, k1h, k1o, k2h, k2o = jax.random.split(key, 5)

    x = jax.random.normal(kx, (B, N), dtype=jnp.float32)

    # Independent weights per branch so the check is not trivially zero
    # (exercises the sign/scale of the branch subtraction).
    w1_hidden = jax.random.normal(k1h, (m, N), dtype=jnp.float32)
    w1_out = jax.random.normal(k1o, (1, m), dtype=jnp.float32)
    w2_hidden = jax.random.normal(k2h, (m, N), dtype=jnp.float32)
    w2_out = jax.random.normal(k2o, (1, m), dtype=jnp.float32)

    out = neural_network_asi(x, w1_hidden, w1_out, w2_hidden, w2_out)
    out = jax.block_until_ready(out)
    ref = _reference(x, w1_hidden, w1_out, w2_hidden, w2_out)
    assert out.shape == (B, 1), out.shape
    assert jnp.allclose(out, ref, atol=1e-5, rtol=1e-5), "mismatch vs reference"

    # Module's actual init copies branch-2 weights from branch-1 -> output ~ 0.
    out_zero = neural_network_asi(x, w1_hidden, w1_out, w1_hidden, w1_out)
    out_zero = jax.block_until_ready(out_zero)
    assert jnp.allclose(out_zero, jnp.zeros_like(out_zero), atol=1e-3), \
        "copied-weight case should be ~zero"

    # Exercise the batch-tiled (gridded, padded) path as well.
    B2 = 520
    x2 = jax.random.normal(kx, (B2, N), dtype=jnp.float32)
    out2 = neural_network_asi(x2, w1_hidden, w1_out, w2_hidden, w2_out, tile_b=256)
    out2 = jax.block_until_ready(out2)
    ref2 = _reference(x2, w1_hidden, w1_out, w2_hidden, w2_out)
    assert out2.shape == (B2, 1), out2.shape
    assert jnp.allclose(out2, ref2, atol=1e-4, rtol=1e-4), "tiled path mismatch"

    print("KERNEL_OK")
</pallas_src>

<mosaic_0001>
module attributes {stable_mosaic.version = 11 : i64} {
  func.func @_asi_fused_kernel(%arg0: memref<8x32xf32, #tpu.memory_space<vmem>>, %arg1: memref<32x64xf32, #tpu.memory_space<vmem>>, %arg2: memref<1x64xf32, #tpu.memory_space<vmem>>, %arg3: memref<8x1xf32, #tpu.memory_space<vmem>>) attributes {dimension_semantics = [], scalar_prefetch = 0 : i64, scratch_operands = 0 : i64, tpu.core_type = #tpu.core_type<tc>} {
    %c0 = arith.constant 0 : index
    %c0_0 = arith.constant 0 : index
    %0 = vector.load %arg0[%c0, %c0_0] : memref<8x32xf32, #tpu.memory_space<vmem>>, vector<8x32xf32>
    %c0_1 = arith.constant 0 : index
    %c0_2 = arith.constant 0 : index
    %1 = vector.load %arg1[%c0_1, %c0_2] : memref<32x64xf32, #tpu.memory_space<vmem>>, vector<32x64xf32>
    %cst = arith.constant dense<0.000000e+00> : vector<8x64xf32>
    %2 = tpu.matmul %0, %1, %cst {dimension_numbers = #tpu.dot_dimension_numbers<[1], [0], [0], [1], [0, 0, 1, 1], [], []>} : vector<8x32xf32>, vector<32x64xf32>, vector<8x64xf32> -> vector<8x64xf32>
    %cst_3 = arith.constant 0.000000e+00 : f32
    %3 = vector.broadcast %cst_3 : f32 to vector<8x64xf32>
    %4 = arith.maximumf %2, %3 : vector<8x64xf32>
    %c0_4 = arith.constant 0 : index
    %c0_5 = arith.constant 0 : index
    %5 = vector.load %arg2[%c0_4, %c0_5] : memref<1x64xf32, #tpu.memory_space<vmem>>, vector<1x64xf32>
    %6 = vector.broadcast %5 : vector<1x64xf32> to vector<8x64xf32>
    %7 = arith.mulf %4, %6 : vector<8x64xf32>
    %cst_6 = arith.constant dense<0.000000e+00> : vector<8xf32>
    %8 = vector.multi_reduction <add>, %7, %cst_6 [1] : vector<8x64xf32> to vector<8xf32>
    %9 = vector.shape_cast %8 : vector<8xf32> to vector<8x1xf32>
    %c0_7 = arith.constant 0 : index
    %c0_8 = arith.constant 0 : index
    %10 = vector.load %arg3[%c0_7, %c0_8] : memref<8x1xf32, #tpu.memory_space<vmem>>, vector<8x1xf32>
    tpu.vector_store %arg3[%c0_7, %c0_8], %9 {strides = array<i32>} : memref<8x1xf32, #tpu.memory_space<vmem>>, vector<8x1xf32>,
    return
  }
}

</mosaic_0001>

<llo_original>
// kernel: tpu_custom_call.1
$region0: #{tpu_custom_call.1}
  #allocation0 [shape = 'u32[]', space=smem, size = 0x4, offset = 0x4, fixed_abs, tag = 'smem constant byte address 0x4 - core index']
  #allocation1 [shape = 'u32[144,128]{1,0:T(1,128)}', space=vmem, size = 0x12000, scoped, tag = 'internal scratch']
  %s0 = inlined_call_operand.hbm [shape: f32[8,32], index: 0, kind: input, shape index: {}]
  %s1 = inlined_call_operand.hbm [shape: f32[32,64], index: 1, kind: input, shape index: {}]
  %s2 = inlined_call_operand.vmem [shape: f32[1,64], index: 2, kind: input, shape index: {}]
  %s3 = inlined_call_operand.vmem [shape: f32[8,1], index: 3, kind: output, shape index: {}]
  %s4 = sld [smem:[#allocation0]]
  $region30: #{tpu_custom_call.1} parent=0
    _
  %s6 = ssub.s32 1, %s4
  %s7 = scalar_select 0, %s6, %s4
  $region1: #{tpu_custom_call.1} parent=0
    #allocation2 [shape = 'u8[4096]{0}', space=vmem, size = 0x1000, scoped, tag = 'input window, operand 0, single buffered']
    #allocation3 [shape = 's32[1]{0}', space=sflag, size = 0x4, scoped, tag = 'scoped memory for tpu_custom_call.1']
    #allocation4 [shape = 'u8[16384]{0}', space=vmem, size = 0x4000, scoped, tag = 'input window, operand 1, single buffered']
    #allocation5 [shape = 's32[1]{0}', space=sflag, size = 0x4, scoped, tag = 'scoped memory for tpu_custom_call.1']
    %8 = vsyncpa [#allocation3], 0
    %9 = vsyncpa [#allocation5], 0
    // Predicated region
    $region2: #{tpu_custom_call.1} parent=1 // pred_check
      _
    $region3: #{tpu_custom_call.1} parent=1 // pred_check_branch
      %11 = sbr.rel (0) target = $region5
    $region4: #{tpu_custom_call.1} parent=1 // pred_region
      %s13 = ssub.s32 128, 128
      %14 = vsyncadd [#allocation3], %s13
      %s16 = sshll.u32 [#allocation2], 4
      %s17 = int_to_ptr.vmem [resolvable:$true] %s16
      %19 = dma.hbm_to_vmem [thread:$0]  %s0, 128, %s17, [#allocation3]
    $region5: #{tpu_custom_call.1} parent=1 // pred_fallthru
      _
    // Predicated region
    $region6: #{tpu_custom_call.1} parent=1 // pred_check
      _
    $region7: #{tpu_custom_call.1} parent=1 // pred_check_branch
      %21 = sbr.rel (0) target = $region9
    $region8: #{tpu_custom_call.1} parent=1 // pred_region
      %s23 = ssub.s32 512, 512
      %24 = vsyncadd [#allocation5], %s23
      %s25 = sshll.u32 [#allocation4], 4
      %s26 = int_to_ptr.vmem [resolvable:$true] %s25
      %31 = dma.hbm_to_vmem [thread:$0]  %s1, 512, %s26, [#allocation5], 128, 128, 8
    $region9: #{tpu_custom_call.1} parent=1 // pred_fallthru
      _
    // Predicated region
    $region10: #{tpu_custom_call.1} parent=1 // pred_check
      _
    $region11: #{tpu_custom_call.1} parent=1 // pred_check_branch
      %33 = sbr.rel (0) target = $region13
    $region12: #{tpu_custom_call.1} parent=1 // pred_region
      _
    $region13: #{tpu_custom_call.1} parent=1 // pred_fallthru
      _
    // Predicated region
    $region14: #{tpu_custom_call.1} parent=1 // pred_check
      _
    $region15: #{tpu_custom_call.1} parent=1 // pred_check_branch
      %35 = sbr.rel (0) target = $region17
    $region16: #{tpu_custom_call.1} parent=1 // pred_region
      %36 = dma.done [#allocation3], 128
    $region17: #{tpu_custom_call.1} parent=1 // pred_fallthru
      _
    // Predicated region
    $region18: #{tpu_custom_call.1} parent=1 // pred_check
      _
    $region19: #{tpu_custom_call.1} parent=1 // pred_check_branch
      %38 = sbr.rel (0) target = $region21
    $region20: #{tpu_custom_call.1} parent=1 // pred_region
      %39 = dma.done [#allocation5], 512
    $region21: #{tpu_custom_call.1} parent=1 // pred_fallthru
      _
    %v40 = vld [vmem:[#allocation2] sm:$0xff]
    %v41 = vld [vmem:[#allocation4] sm:$0xff]
    %v42 = vld [vmem:[#allocation4 + $0x8] sm:$0xff]
    %v43 = vld [vmem:[#allocation4 + $0x10] sm:$0xff]
    %v44 = vld [vmem:[#allocation4 + $0x18] sm:$0xff]
    %vm45 = vcmask 261120
    %v47 = vsel %vm45, %v40, 0
    %49 = vmatprep.subr.mxu0 0.0
    %50 = vmatpush1.msra.mxu0 %v41
    %51 = vmatprep.subr.mxu0 0.0
    %52 = vmatpush1.msra.mxu0 %v42
    %53 = vmatprep.subr.mxu0 0.0
    %54 = vmatpush1.msra.mxu0 %v43
    %55 = vmatprep.subr.mxu0 0.0
    %56 = vmatpush1.msra.mxu0 %v44
    %57 = vmatprep.subr.mxu0 0.0
    %58 = vmatpush1.msra.mxu0 0.0
    %59 = vmatprep.subr.mxu0 0.0
    %60 = vmatpush1.msra.mxu0 0.0
    %61 = vmatprep.subr.mxu0 0.0
    %62 = vmatpush1.msra.mxu0 0.0
    %63 = vmatprep.subr.mxu0 0.0
    %64 = vmatpush1.msra.mxu0 0.0
    %65 = vmatprep.subr.mxu0 0.0
    %66 = vmatpush1.msra.mxu0 0.0
    %67 = vmatprep.subr.mxu0 0.0
    %68 = vmatpush1.msra.mxu0 0.0
    %69 = vmatprep.subr.mxu0 0.0
    %70 = vmatpush1.msra.mxu0 0.0
    %71 = vmatprep.subr.mxu0 0.0
    %72 = vmatpush1.msra.mxu0 0.0
    %73 = vmatprep.subr.mxu0 0.0
    %74 = vmatpush1.msra.mxu0 0.0
    %75 = vmatprep.subr.mxu0 0.0
    %76 = vmatpush1.msra.mxu0 0.0
    %77 = vmatprep.subr.mxu0 0.0
    %78 = vmatpush1.msra.mxu0 0.0
    %79 = vmatprep.subr.mxu0 0.0
    %80 = vmatpush1.msra.mxu0 0.0
    %81 = vmatprep.subr.mxu0 0.0
    %82 = vmatpush1.msra.mxu0 0.0
    %83 = vmatprep.subr.mxu0 0.0
    %84 = vmatpush1.msra.mxu0 0.0
    %85 = vmatprep.subr.mxu0 0.0
    %86 = vmatpush1.msra.mxu0 0.0
    %87 = vmatprep.subr.mxu0 0.0
    %88 = vmatpush1.msra.mxu0 0.0
    %89 = vmatprep.subr.mxu0 0.0
    %90 = vmatpush1.msra.mxu0 0.0
    %91 = vmatprep.subr.mxu0 0.0
    %92 = vmatpush1.msra.mxu0 0.0
    %93 = vmatprep.subr.mxu0 0.0
    %94 = vmatpush1.msra.mxu0 0.0
    %95 = vmatprep.subr.mxu0 0.0
    %96 = vmatpush1.msra.mxu0 0.0
    %97 = vmatprep.subr.mxu0 0.0
    %98 = vmatpush1.msra.mxu0 0.0
    %99 = vmatprep.subr.mxu0 0.0
    %100 = vmatpush1.msra.mxu0 0.0
    %101 = vmatprep.subr.mxu0 0.0
    %102 = vmatpush1.msra.mxu0 0.0
    %103 = vmatprep.subr.mxu0 0.0
    %104 = vmatpush1.msra.mxu0 0.0
    %105 = vmatprep.subr.mxu0 0.0
    %106 = vmatpush1.msra.mxu0 0.0
    %107 = vmatprep.subr.mxu0 0.0
    %108 = vmatpush1.msra.mxu0 0.0
    %109 = vmatprep.subr.mxu0 0.0
    %110 = vmatpush1.msra.mxu0 0.0
    %111 = vmatprep.subr.mxu0 0.0
    %112 = vmatpush1.msra.mxu0 0.0
    %113 = vmatprep.mubr.f32.mxu0 0.0
    %114 = vmatmul.mubr.f32.gmra.mrb[0].mxu0 %v47
    %v115 = vpop.f32.mrb[0].mxu0
    %v116 = vadd.f32 0.0, %v115
    %v117 = vpop.f32.mrb[0].mxu0
    %118 = vdwg.mxu0
    %v119 = vmax.f32 %v116, 0.0
    %v120 = vld [vmem:[%s2] sm:$0x1]
    %v122 = vlaneseq
    %v123 = vshrl.u32 %v122, 7
    %v124 = vsub.s32 0, %v123
    %v125 = vrot.slane %v120, %v124
    %v127 = vmul.f32 %v119, %v125
    %vm128 = vcmask 523264
    %v129 = vsel %vm128, %v127, 0.0
    %130 = vadd.xlane.f32.xlu0 %v129
    %v131 = vpop.xlane.xlu0 %130
    %vm132 = vcmask 7168
    %133 = vst.msk [vmem:[%s3] sm:$0xff] %vm132, %v131
    // Predicated region
    $region22: #{tpu_custom_call.1} parent=1 // pred_check
      _
    $region23: #{tpu_custom_call.1} parent=1 // pred_check_branch
      %135 = sbr.rel (0) target = $region25
    $region24: #{tpu_custom_call.1} parent=1 // pred_region
      _
    $region25: #{tpu_custom_call.1} parent=1 // pred_fallthru
      _
    // Predicated region
    $region26: #{tpu_custom_call.1} parent=1 // pred_check
      _
    $region27: #{tpu_custom_call.1} parent=1 // pred_check_branch
      %137 = sbr.rel (0) target = $region29
    $region28: #{tpu_custom_call.1} parent=1 // pred_region
      _
    $region29: #{tpu_custom_call.1} parent=1 // pred_fallthru
      _
    %138 = vsyncpa [#allocation3], 1
    %139 = vsyncpa [#allocation5], 1

</llo_original>
